<compile_context>
chip_gen: v5e
topology: v5e:2x2
jax: 0.10.0
libtpu: 0.0.40
codegen_flags: <defaults>
</compile_context>

<pallas_src>
import functools

import jax
import jax.numpy as jnp
from jax.experimental import pallas as pl
from jax.experimental.pallas import tpu as pltpu

_BN_EPS = 1e-5
_LANE = 128
_SUBLANE = 8
_BF16_SUBLANE = 16

PRIMS_REDUCE = ("conv3x3", "conv1x1")
PRIMS_NORMAL = ("conv3x3", "conv1x1", "skip_connect")


# ----------------------------------------------------------------------------
# Small hardware / math helpers
# ----------------------------------------------------------------------------
def _round_up(v, m):
    return -(-v // m) * m


def _tpu_vmem_capacity_bytes():
    try:
        cap = int(pltpu.get_tpu_info().vmem_capacity_bytes)
        if cap > 0:
            return cap
    except Exception:
        pass
    return 64 * 1024 * 1024          # conservative fallback (v7x-sized VMEM)


def _tensorcores_per_chip():
    try:
        kind = jax.devices()[0].device_kind.lower()
        if "v7" in kind:
            return 2
    except Exception:
        pass
    return 1


# ----------------------------------------------------------------------------
# Pallas kernel: one fused MixedOp layer, one (Cout_p, tm) output tile
#   y   = relu( W_stack(nbc*Cout_p, kp) @ P(kp, tm) + bias_stack )   (MXU, f32 acc)
#   out = sum_b y[b*Cout_p:(b+1)*Cout_p]  ( + op_w[skip] * centre_tap(P) )
# BN scale AND the softmaxed branch weight are already folded into W/bias.
# ----------------------------------------------------------------------------
def _mixed_op_kernel(opw_ref, w_ref, b_ref, p_ref, o_ref, *,
                     nbc, cout_p, skip_pos, skip_row):
    y = jnp.dot(w_ref[...], p_ref[...], preferred_element_type=jnp.float32)
    y = jnp.maximum(y + b_ref[...], 0.0)
    acc = y[0:cout_p, :]
    for br in range(1, nbc):
        acc = acc + y[br * cout_p:(br + 1) * cout_p, :]
    if skip_pos is not None:
        # skip_connect input == centre-tap rows of the shared patch block
        # (identical to x when stride == 1) -> no separate HBM stream.
        xs = p_ref[skip_row:skip_row + cout_p, :].astype(jnp.float32)
        acc = acc + opw_ref[skip_pos] * xs
    o_ref[...] = acc.astype(o_ref.dtype)


# ----------------------------------------------------------------------------
# Plain-JAX glue
# ----------------------------------------------------------------------------
def _im2col_t(xt, ksize, stride, pad, ho, wo):
    """Transposed patches (k*k*C, N*Ho*Wo); row order = (dy, dx, ci)."""
    c, n, _, _ = xt.shape
    if ksize == 1 and pad == 0:
        sl = xt if stride == 1 else xt[:, :, ::stride, ::stride]
        return sl.reshape(c, n * ho * wo)
    xp = jnp.pad(xt, ((0, 0), (0, 0), (pad, pad), (pad, pad)))
    cols = []
    for dy in range(ksize):
        for dx in range(ksize):
            cols.append(xp[:, :, dy:dy + stride * ho:stride, dx:dx + stride * wo:stride])
    pt = jnp.stack(cols, axis=0)                       # (k*k, C, N, Ho, Wo)
    return pt.reshape(ksize * ksize * c, n * ho * wo)  # (K, M)


def _plan_m_tile(m_lane, working_bytes_fn, budget, tc_per_chip):
    """Largest M tile whose full working set fits the budget; M is padded to it."""
    cands = [t for t in (1024, 512, 256, 128) if t <= max(_LANE, m_lane)]
    tm = _LANE
    for t in cands:
        if working_bytes_fn(t) <= budget:
            tm = t
            break
    # v7x has 2 TensorCores per chip: make sure the "parallel" M axis has at
    # least 2 grid steps so megacore sharding / DMA pipelining can engage.
    if tc_per_chip >= 2 and m_lane >= 2 * _LANE:
        tm = min(tm, max(_LANE, (m_lane // 2) // _LANE * _LANE))
    return tm, _round_up(m_lane, tm)


def mixed_op_forward(xt, layer, weight_vec, branch_indices, layer_sub_obj):
    """One MixedOp layer.  xt: (Cin, N, H, W) channel-first bf16 activations."""
    cin, n, h, w = xt.shape
    stride = layer["stride"]
    prims = layer["primitives"]

    sel = jnp.stack([weight_vec[i] for i in branch_indices])
    op_w = jax.nn.softmax(sel, axis=-1).astype(jnp.float32)
    sub = jnp.sum(op_w * jnp.stack([layer_sub_obj[i] for i in branch_indices]))

    ho = (h - 1) // stride + 1
    wo = (w - 1) // stride + 1
    m = n * ho * wo

    conv_sel = [(pos, bi) for pos, bi in enumerate(branch_indices)
                if prims[bi] != "skip_connect"]
    skip_pos = None
    for pos, bi in enumerate(branch_indices):
        if prims[bi] == "skip_connect":
            skip_pos = pos

    cout = cin
    for _, bi in conv_sel:
        cout = layer["ops"][bi]["w"].shape[-1]
        break

    if not conv_sel:
        # Pure skip_connect layer: scalar * tensor, no kernel needed.
        if stride != 1:
            raise ValueError("skip_connect requires stride == 1")
        return (op_w[skip_pos] * xt.astype(jnp.float32)).astype(jnp.bfloat16), sub

    if skip_pos is not None and (stride != 1 or cin != cout):
        raise ValueError("skip_connect requires stride == 1 and Cin == Cout")

    nbc = len(conv_sel)
    cout_p = _round_up(cout, _SUBLANE)
    ksizes = [layer["ops"][bi]["w"].shape[0] for _, bi in conv_sel]
    kmax = max(ksizes)
    pad = (kmax - 1) // 2
    k_rows = kmax * kmax * cin
    kp = _round_up(k_rows, _BF16_SUBLANE)          # bf16 packs 2 sublanes / 32b row
    center_row = ((kmax // 2) * kmax + (kmax // 2)) * cin   # (dy, dx, ci) ordering

    # --- single shared patch block; 1x1 / skip reuse the centre-tap rows ------
    patches = _im2col_t(xt, kmax, stride, pad, ho, wo).astype(jnp.bfloat16)
    if kp != k_rows:
        patches = jnp.pad(patches, ((0, kp - k_rows), (0, 0)))

    # --- stacked pre-scaled weights: every conv branch in ONE MXU pass --------
    w_rows, bias_rows = [], []
    for pos, bi in conv_sel:
        op = layer["ops"][bi]
        k = op["w"].shape[0]
        scale = op["gamma"] * jax.lax.rsqrt(op["rv"] + _BN_EPS)
        bias = op["beta"] - op["rm"] * scale
        # Fold eval-mode BN AND the strictly positive softmax branch weight.
        scale = scale * op_w[pos]
        bias = bias * op_w[pos]
        wmat = op["w"].reshape(k * k * cin, cout) * scale[None, :]   # (k*k*Cin, Cout)
        wt = jnp.zeros((cout_p, kp), jnp.float32)
        if k == kmax:
            wt = wt.at[:cout, :k_rows].set(wmat.T)
        else:   # 1x1 branch embedded at the centre-tap rows of the 3x3 patches
            wt = wt.at[:cout, center_row:center_row + cin].set(wmat.T)
        bt = jnp.zeros((cout_p, 1), jnp.float32).at[:cout, 0].set(bias)
        w_rows.append(wt)
        bias_rows.append(bt)
    w_stack = jnp.concatenate(w_rows, axis=0).astype(jnp.bfloat16)   # (nbc*Cout_p, kp)
    b_stack = jnp.concatenate(bias_rows, axis=0)                     # (nbc*Cout_p, 1) f32
    rows_w = nbc * cout_p

    # --- tiling / VMEM plan -----------------------------------------------------
    m_lane = _round_up(m, _LANE)
    vmem_cap = _tpu_vmem_capacity_bytes()
    budget = max(8 << 20, min(32 << 20, vmem_cap // 4))  # ~32 MiB v5e/v6e, ~16 MiB v7x

    def working_bytes(tm):
        return (2 * kp * tm * 2                 # patch tile, double-buffered bf16
                + 2 * cout_p * tm * 2           # output tile, double-buffered bf16
                + 2 * rows_w * kp * 2           # stacked weights (grid-invariant)
                + 2 * rows_w * _LANE * 4        # bias, lane-padded f32
                + (rows_w + cout_p) * tm * 4)   # f32 matmul result + accumulator

    tm, m_final = _plan_m_tile(m_lane, working_bytes, budget, _tensorcores_per_chip())
    vmem_limit = int(min(vmem_cap // 2,
                         max(24 << 20, 2 * working_bytes(tm) + (8 << 20))))

    if patches.shape[1] != m_final:
        patches = jnp.pad(patches, ((0, 0), (0, m_final - patches.shape[1])))

    kernel = functools.partial(_mixed_op_kernel, nbc=nbc, cout_p=cout_p,
                               skip_pos=skip_pos, skip_row=center_row)

    out = pl.pallas_call(
        kernel,
        out_shape=jax.ShapeDtypeStruct((cout_p, m_final), jnp.bfloat16),
        grid=(m_final // tm,),
        in_specs=[
            pl.BlockSpec(memory_space=pltpu.MemorySpace.SMEM),   # op_w (nb,) scalars
            pl.BlockSpec((rows_w, kp), lambda i: (0, 0)),        # stacked weights
            pl.BlockSpec((rows_w, 1), lambda i: (0, 0)),         # stacked bias
            pl.BlockSpec((kp, tm), lambda i: (0, i)),            # shared patches
        ],
        out_specs=pl.BlockSpec((cout_p, tm), lambda i: (0, i)),
        compiler_params=pltpu.CompilerParams(
            dimension_semantics=("parallel",),
            vmem_limit_bytes=vmem_limit),
    )(op_w, w_stack, b_stack, patches)

    x_out = out[:cout, :m].reshape(cout, n, ho, wo)
    return x_out, sub


def block_forward(x_nchw, layers, weights_normal, weights_reduce, branch_index,
                  block_sub_obj):
    """Matches Block.forward: x in NCHW, returns (x_out NCHW f32, summed sub-obj)."""
    # Channel-first (C, N, H, W) bf16 between layers: lane-dense GEMM outputs,
    # half the inter-layer HBM bytes; the MXU consumes bf16 anyway.
    xt = jnp.transpose(x_nchw, (1, 0, 2, 3)).astype(jnp.bfloat16)
    weights = list(weights_reduce) + list(weights_normal)
    count_sub_obj = []
    for layer, weight, b_idx, layer_sub_obj in zip(layers, weights, branch_index,
                                                   block_sub_obj):
        xt, sub = mixed_op_forward(xt, layer, weight, b_idx, layer_sub_obj)
        count_sub_obj.append(sub)
    return jnp.transpose(xt, (1, 0, 2, 3)).astype(jnp.float32), sum(count_sub_obj)


# ----------------------------------------------------------------------------
# Deterministic parameter initialization (representative OPS set)
# ----------------------------------------------------------------------------
def init_conv_op(key, ksize, cin, cout):
    k1, k2, k3 = jax.random.split(key, 3)
    return dict(
        w=0.1 * jax.random.normal(k1, (ksize, ksize, cin, cout), jnp.float32),  # HWIO
        gamma=1.0 + 0.1 * jax.random.normal(k2, (cout,), jnp.float32),
        beta=0.05 * jax.random.normal(k3, (cout,), jnp.float32),
        rm=jnp.zeros((cout,), jnp.float32),
        rv=jnp.ones((cout,), jnp.float32),
    )


def init_block(key, c_in, c_out, stride, num_layer):
    layers = []
    for i in range(num_layer):
        prims = PRIMS_REDUCE if i == 0 else PRIMS_NORMAL
        cin = c_in if i == 0 else c_out
        s = stride if i == 0 else 1
        ops = {}
        for j, prim in enumerate(prims):
            key, sub = jax.random.split(key)
            if prim == "skip_connect":
                ops[j] = None
            else:
                ksize = 3 if prim == "conv3x3" else 1
                ops[j] = init_conv_op(sub, ksize, cin, c_out)
        layers.append(dict(primitives=prims, ops=ops, stride=s))
    return layers


# ----------------------------------------------------------------------------
# Pure-JAX reference (f32) for a numerical sanity check
# ----------------------------------------------------------------------------
def _ref_mixed_op(x_nchw, layer, weight_vec, branch_indices, layer_sub_obj):
    sel = jnp.stack([weight_vec[i] for i in branch_indices])
    op_w = jax.nn.softmax(sel, axis=-1)
    outs = []
    for pos, bi in enumerate(branch_indices):
        prim = layer["primitives"][bi]
        if prim == "skip_connect":
            y = x_nchw
        else:
            op = layer["ops"][bi]
            k = op["w"].shape[0]
            pad = (k - 1) // 2
            y = jax.lax.conv_general_dilated(
                x_nchw, op["w"], (layer["stride"],) * 2, ((pad, pad), (pad, pad)),
                dimension_numbers=("NCHW", "HWIO", "NCHW"))
            scale = op["gamma"] / jnp.sqrt(op["rv"] + _BN_EPS)
            bias = op["beta"] - op["rm"] * scale
            y = jnp.maximum(y * scale[None, :, None, None] + bias[None, :, None, None], 0.0)
        outs.append(op_w[pos] * y)
    sub = jnp.sum(op_w * jnp.stack([layer_sub_obj[i] for i in branch_indices]))
    return sum(outs), sub


def _ref_block(x_nchw, layers, weights_normal, weights_reduce, branch_index,
               block_sub_obj):
    weights = list(weights_reduce) + list(weights_normal)
    subs = []
    for layer, weight, b_idx, layer_sub_obj in zip(layers, weights, branch_index,
                                                   block_sub_obj):
        x_nchw, s = _ref_mixed_op(x_nchw, layer, weight, b_idx, layer_sub_obj)
        subs.append(s)
    return x_nchw, sum(subs)


# ----------------------------------------------------------------------------
if __name__ == "__main__":
    key = jax.random.PRNGKey(0)
    k_x, k_p, k_wr, k_wn = jax.random.split(key, 4)

    N, C_in, H, W = 2, 4, 16, 16
    C_out, stride, num_layer = 8, 2, 2

    # PyTorch-style NCHW input.
    x_nchw = jax.random.normal(k_x, (N, C_in, H, W), jnp.float32)

    layers = init_block(k_p, C_in, C_out, stride, num_layer)

    # Architecture weights: one reduce layer, num_layer-1 normal layers.
    weights_reduce = [0.1 * jax.random.normal(k_wr, (len(PRIMS_REDUCE),), jnp.float32)]
    weights_normal = [
        0.1 * jax.random.normal(jax.random.fold_in(k_wn, i), (len(PRIMS_NORMAL),), jnp.float32)
        for i in range(num_layer - 1)
    ]
    branch_index = [(0, 1), (0, 2)]     # layer 0: conv3x3+conv1x1; layer 1: conv3x3+skip
    block_sub_obj = [
        jnp.array([1.0, 2.0], jnp.float32),
        jnp.array([1.5, 2.5, 0.5], jnp.float32),
    ]

    out, total_sub_obj = block_forward(
        x_nchw, layers, weights_normal, weights_reduce, branch_index, block_sub_obj)
    jax.block_until_ready(out)
    jax.block_until_ready(total_sub_obj)

    assert out.shape == (N, C_out, H // stride, W // stride)

    # Loose numerical check vs a pure-JAX f32 reference (kernel uses bf16 MXU
    # operands and bf16 inter-layer activations, so tolerances are generous).
    ref_out, ref_sub = _ref_block(
        x_nchw, layers, weights_normal, weights_reduce, branch_index, block_sub_obj)
    max_err = float(jnp.max(jnp.abs(out - ref_out)))
    sub_err = float(jnp.abs(total_sub_obj - ref_sub))
    assert max_err < 1e-1, f"activation mismatch vs reference: {max_err}"
    assert sub_err < 1e-5, f"sub-objective mismatch vs reference: {sub_err}"

    print("KERNEL_OK")
</pallas_src>

<mosaic_0001>
module attributes {stable_mosaic.version = 11 : i64} {
  func.func @_mixed_op_kernel(%arg0: i32, %arg1: memref<2xf32, #tpu.memory_space<smem>>, %arg2: memref<16x48xbf16, #tpu.memory_space<vmem>>, %arg3: memref<16x1xf32, #tpu.memory_space<vmem>>, %arg4: memref<48x128xbf16, #tpu.memory_space<vmem>>, %arg5: memref<8x128xbf16, #tpu.memory_space<vmem>>) attributes {dimension_semantics = [#tpu.dimension_semantics<parallel>], iteration_bounds = array<i64: 1>, scalar_prefetch = 0 : i64, scratch_operands = 0 : i64, tpu.core_type = #tpu.core_type<tc>, window_params = [{transform_indices = @transform_0, window_bounds = array<i64: 2>}, {pipeline_mode = #tpu.pipeline_mode<synchronous>, transform_indices = @transform_1, window_bounds = array<i64: 16, 48>}, {pipeline_mode = #tpu.pipeline_mode<synchronous>, transform_indices = @transform_2, window_bounds = array<i64: 16, 1>}, {transform_indices = @transform_3, window_bounds = array<i64: 48, 128>}, {transform_indices = @transform_4, window_bounds = array<i64: 8, 128>}]} {
    %c0 = arith.constant 0 : index
    %c0_0 = arith.constant 0 : index
    %0 = vector.load %arg2[%c0, %c0_0] : memref<16x48xbf16, #tpu.memory_space<vmem>>, vector<16x48xbf16>
    %c0_1 = arith.constant 0 : index
    %c0_2 = arith.constant 0 : index
    %1 = vector.load %arg4[%c0_1, %c0_2] : memref<48x128xbf16, #tpu.memory_space<vmem>>, vector<48x128xbf16>
    %cst = arith.constant dense<0.000000e+00> : vector<16x128xf32>
    %2 = tpu.matmul %0, %1, %cst {dimension_numbers = #tpu.dot_dimension_numbers<[1], [0], [0], [1], [0, 0, 1, 1], [], []>} : vector<16x48xbf16>, vector<48x128xbf16>, vector<16x128xf32> -> vector<16x128xf32>
    %c0_3 = arith.constant 0 : index
    %c0_4 = arith.constant 0 : index
    %3 = vector.load %arg3[%c0_3, %c0_4] : memref<16x1xf32, #tpu.memory_space<vmem>>, vector<16x1xf32>
    %4 = vector.broadcast %3 : vector<16x1xf32> to vector<16x128xf32>
    %5 = arith.addf %2, %4 : vector<16x128xf32>
    %cst_5 = arith.constant 0.000000e+00 : f32
    %6 = vector.broadcast %cst_5 : f32 to vector<16x128xf32>
    %7 = arith.maximumf %5, %6 : vector<16x128xf32>
    %8 = vector.extract_strided_slice %7 {offsets = [0, 0], sizes = [8, 128], strides = [1, 1]} : vector<16x128xf32> to vector<8x128xf32>
    %9 = vector.extract_strided_slice %7 {offsets = [8, 0], sizes = [8, 128], strides = [1, 1]} : vector<16x128xf32> to vector<8x128xf32>
    %10 = arith.addf %8, %9 : vector<8x128xf32>
    %11 = arith.truncf %10 : vector<8x128xf32> to vector<8x128xbf16>
    %c0_6 = arith.constant 0 : index
    %c0_7 = arith.constant 0 : index
    %12 = vector.load %arg5[%c0_6, %c0_7] : memref<8x128xbf16, #tpu.memory_space<vmem>>, vector<8x128xbf16>
    tpu.vector_store %arg5[%c0_6, %c0_7], %11 {strides = array<i32>} : memref<8x128xbf16, #tpu.memory_space<vmem>>, vector<8x128xbf16>,
    return
  }
  func.func @transform_0(%arg0: i32) -> i32 {
    %c0_i32 = arith.constant 0 : i32
    %c0_i32_0 = arith.constant 0 : i32
    return %c0_i32 : i32
  }
  func.func @transform_1(%arg0: i32) -> (i32, i32) {
    %c0_i32 = arith.constant 0 : i32
    %c0_i32_0 = arith.constant 0 : i32
    %c0_i32_1 = arith.constant 0 : i32
    return %c0_i32, %c0_i32_0 : i32, i32
  }
  func.func @transform_2(%arg0: i32) -> (i32, i32) {
    %c0_i32 = arith.constant 0 : i32
    %c0_i32_0 = arith.constant 0 : i32
    %c0_i32_1 = arith.constant 0 : i32
    return %c0_i32, %c0_i32_0 : i32, i32
  }
  func.func @transform_3(%arg0: i32) -> (i32, i32) {
    %c0_i32 = arith.constant 0 : i32
    %c0_i32_0 = arith.constant 0 : i32
    return %c0_i32, %arg0 : i32, i32
  }
  func.func @transform_4(%arg0: i32) -> (i32, i32) {
    %c0_i32 = arith.constant 0 : i32
    %c0_i32_0 = arith.constant 0 : i32
    return %c0_i32, %arg0 : i32, i32
  }
}

</mosaic_0001>

<llo_original>
// kernel: tpu_custom_call.1
$region0: #{tpu_custom_call.1}
  #allocation0 [shape = 'u32[]', space=smem, size = 0x4, offset = 0x4, fixed_abs, tag = 'smem constant byte address 0x4 - core index']
  #allocation1 [shape = 'u32[72,128]{1,0:T(1,128)}', space=vmem, size = 0x9000, scoped, tag = 'internal scratch']
  %s0 = inlined_call_operand.vmem [shape: f32[2], index: 0, kind: input, shape index: {}]
  %s1 = inlined_call_operand.vmem [shape: bf16[16,48], index: 1, kind: input, shape index: {}]
  %s2 = inlined_call_operand.vmem [shape: f32[16,1], index: 2, kind: input, shape index: {}]
  %s3 = inlined_call_operand.hbm [shape: bf16[48,128], index: 3, kind: input, shape index: {}]
  %s4 = inlined_call_operand.hbm [shape: bf16[8,128], index: 4, kind: output, shape index: {}]
  %s5 = sld [smem:[#allocation0]]
  $region34: #{tpu_custom_call.1} parent=0
    _
  %s7 = ssub.s32 1, %s5
  %s8 = scalar_select 0, %s7, %s5
  $region1: #{tpu_custom_call.1} parent=0
    #allocation2 [shape = 'u8[512]{0}', space=smem, size = 0x200, scoped, tag = 'input window, operand 0, single buffered']
    #allocation3 [shape = 's32[1]{0}', space=sflag, size = 0x4, scoped, tag = 'scoped memory for tpu_custom_call.1']
    #allocation4 [shape = 's32[1]{0}', space=sflag, size = 0x4, scoped, tag = 'scoped memory for tpu_custom_call.1']
    #allocation5 [shape = 's32[1]{0}', space=sflag, size = 0x4, scoped, tag = 'scoped memory for tpu_custom_call.1']
    #allocation6 [shape = 'u8[12288]{0}', space=vmem, size = 0x3000, scoped, tag = 'input window, operand 3, single buffered']
    #allocation7 [shape = 'u8[2048]{0}', space=vmem, size = 0x800, scoped, tag = 'output window, operand 0, single buffered']
    %9 = vsyncpa [#allocation5], 0
    %10 = vsyncpa [#allocation3], 0
    %11 = vsyncpa [#allocation4], 0
    // Predicated region
    $region2: #{tpu_custom_call.1} parent=1 // pred_check
      _
    $region3: #{tpu_custom_call.1} parent=1 // pred_check_branch
      %13 = sbr.rel (0) target = $region5
    $region4: #{tpu_custom_call.1} parent=1 // pred_region
      %15 = vsyncadd [#allocation5], 0
      %s17 = sshll.u32 %s0, 4
      %s18 = int_to_ptr.vmem [resolvable:$true] %s17
      %20 = dma.vmem_to_smem %s18, 16, [#allocation2], [#allocation5]
    $region5: #{tpu_custom_call.1} parent=1 // pred_fallthru
      _
    // Predicated region
    $region6: #{tpu_custom_call.1} parent=1 // pred_check
      _
    $region7: #{tpu_custom_call.1} parent=1 // pred_check_branch
      %22 = sbr.rel (0) target = $region9
    $region8: #{tpu_custom_call.1} parent=1 // pred_region
      _
    $region9: #{tpu_custom_call.1} parent=1 // pred_fallthru
      _
    // Predicated region
    $region10: #{tpu_custom_call.1} parent=1 // pred_check
      _
    $region11: #{tpu_custom_call.1} parent=1 // pred_check_branch
      %24 = sbr.rel (0) target = $region13
    $region12: #{tpu_custom_call.1} parent=1 // pred_region
      _
    $region13: #{tpu_custom_call.1} parent=1 // pred_fallthru
      _
    // Predicated region
    $region14: #{tpu_custom_call.1} parent=1 // pred_check
      _
    $region15: #{tpu_custom_call.1} parent=1 // pred_check_branch
      %26 = sbr.rel (0) target = $region17
    $region16: #{tpu_custom_call.1} parent=1 // pred_region
      %28 = vsyncadd [#allocation3], 0
      %s29 = sshll.u32 %s3, 4
      %s30 = int_to_ptr.hbm [resolvable:$true] %s29
      %s31 = sshll.u32 [#allocation6], 4
      %s32 = int_to_ptr.vmem [resolvable:$true] %s31
      %37 = dma.hbm_to_vmem [thread:$0]  %s30, 384, %s32, [#allocation3], 64, 64, 4
    $region17: #{tpu_custom_call.1} parent=1 // pred_fallthru
      _
    // Predicated region
    $region18: #{tpu_custom_call.1} parent=1 // pred_check
      _
    $region19: #{tpu_custom_call.1} parent=1 // pred_check_branch
      %39 = sbr.rel (0) target = $region21
    $region20: #{tpu_custom_call.1} parent=1 // pred_region
      %41 = dma.done [#allocation5], 16
    $region21: #{tpu_custom_call.1} parent=1 // pred_fallthru
      _
    // Predicated region
    $region22: #{tpu_custom_call.1} parent=1 // pred_check
      _
    $region23: #{tpu_custom_call.1} parent=1 // pred_check_branch
      %43 = sbr.rel (0) target = $region25
    $region24: #{tpu_custom_call.1} parent=1 // pred_region
      %45 = dma.done [#allocation3], 384
    $region25: #{tpu_custom_call.1} parent=1 // pred_fallthru
      _
    %46 = sfence
    %v48 = vld [vmem:[%s1] sm:$0xf]
    %v49 = vld [vmem:[%s1 + $0x4] sm:$0xf]
    %v50 = vld [vmem:[#allocation6] sm:$0xf]
    %v51 = vld [vmem:[#allocation6 + $0x4] sm:$0xf]
    %v52 = vld [vmem:[#allocation6 + $0x8] sm:$0xf]
    %v53 = vld [vmem:[#allocation6 + $0xc] sm:$0xf]
    %v54 = vld [vmem:[#allocation6 + $0x10] sm:$0xf]
    %v55 = vld [vmem:[#allocation6 + $0x14] sm:$0xf]
    %v56 = vld [vmem:[%s2] sm:$0xff]
    %v57 = vld [vmem:[%s2 + $0x8] sm:$0xff]
    %59 = vset.pattern.permute.xlu0 0
    %60 = vperm.xlu0 %59, %v56
    %v61 = vpop.permute.xlu0 %60
    %64 = vset.pattern.permute.xlu0 0
    %65 = vperm.xlu0 %64, %v57
    %v66 = vpop.permute.xlu0 %65
    %v70 = vunpack.c.l.b16 %v48
    %v71 = vunpack.c.l.b16 %v49
    %v72 = vpack.c.b16 %v71, %v70
    %v79 = vunpack.c.l.b16 %v50
    %v80 = vunpack.c.l.b16 %v51
    %v81 = vunpack.c.l.b16 %v52
    %v82 = vunpack.c.l.b16 %v53
    %v83 = vunpack.c.l.b16 %v54
    %v84 = vunpack.c.l.b16 %v55
    %v85 = vpack.c.b16 %v80, %v79
    %v86 = vpack.c.b16 %v82, %v81
    %v87 = vpack.c.b16 %v84, %v83
    %vm91 = vcmask 392192
    %v93 = vsel %vm91, %v72, 0
    %95 = vmatpush.bf16.msra.mxu0 0
    %96 = vmatpush.bf16.msra.mxu0 0
    %97 = vmatpush.bf16.msra.mxu0 0
    %98 = vmatpush.bf16.msra.mxu0 0
    %99 = vmatpush.bf16.msra.mxu0 0
    %100 = vmatpush.bf16.msra.mxu0 %v87
    %101 = vmatpush.bf16.msra.mxu0 %v86
    %102 = vmatpush.bf16.msra.mxu0 %v85
    %103 = vmatmul.bf16.gmra.mxu0 %v93
    %v104 = vpop.f32.mrf.mxu0
    %v105 = vadd.f32 %v61, %v104
    %v106 = vpop.f32.mrf.mxu0
    %v107 = vadd.f32 %v66, %v106
    %108 = vdwg.mxu0
    %v109 = vmax.f32 %v105, 0.0
    %v110 = vmax.f32 %v107, 0.0
    %v111 = vadd.f32 %v109, %v110
    %v112 = vpack.c.bf16 %v111, %v111
    %113 = vst [vmem:[#allocation7] sm:$0xf] %v112
    // Predicated region
    $region26: #{tpu_custom_call.1} parent=1 // pred_check
      _
    $region27: #{tpu_custom_call.1} parent=1 // pred_check_branch
      %115 = sbr.rel (0) target = $region29
    $region28: #{tpu_custom_call.1} parent=1 // pred_region
      %117 = vsyncadd [#allocation4], 0
      %s119 = sshll.u32 [#allocation7], 4
      %s120 = int_to_ptr.vmem [resolvable:$true] %s119
      %s121 = sshll.u32 %s4, 4
      %s122 = int_to_ptr.hbm [resolvable:$true] %s121
      %124 = dma.vmem_to_hbm [thread:$0]  %s120, 64, %s122, [#allocation4]
    $region29: #{tpu_custom_call.1} parent=1 // pred_fallthru
      _
    // Predicated region
    $region30: #{tpu_custom_call.1} parent=1 // pred_check
      _
    $region31: #{tpu_custom_call.1} parent=1 // pred_check_branch
      %126 = sbr.rel (0) target = $region33
    $region32: #{tpu_custom_call.1} parent=1 // pred_region
      %128 = dma.done [#allocation4], 64
    $region33: #{tpu_custom_call.1} parent=1 // pred_fallthru
      _
    %129 = vsyncpa [#allocation3], 1
    %130 = vsyncpa [#allocation4], 1
    %131 = vsyncpa [#allocation5], 1

</llo_original>
